<compile_context>
chip_gen: v5e
topology: v5e:2x2
jax: 0.10.0
libtpu: 0.0.40
codegen_flags: <defaults>
</compile_context>

<pallas_src>
import functools

import jax
import jax.numpy as jnp
from jax.experimental import pallas as pl
from jax.experimental.pallas import tpu as pltpu


_VMEM = pl.BlockSpec(memory_space=pltpu.MemorySpace.VMEM)
_SMEM = pl.BlockSpec(memory_space=pltpu.MemorySpace.SMEM)


def _fused_bc_kernel(pvel_ref, tvel_ref, pgrip_ref, tgrip_ref, out_ref, *, lam):
    """MSE(vel) + BCE(grip) + lam-mix in one kernel; 3 scalars -> one 1D SMEM f32[3]."""
    # --- MSE on 'vel' (mean reduction); static divisor folded to a multiply ---
    inv_n_vel = 1.0 / float(pvel_ref.shape[0] * pvel_ref.shape[1])
    dv = pvel_ref[...].astype(jnp.float32) - tvel_ref[...].astype(jnp.float32)
    loss_vel = jnp.sum(dv * dv) * jnp.float32(inv_n_vel)

    # --- BCE on 'grip' (mean reduction), PyTorch-style -100 log clamp ---
    # Single EUP log pass over concat([p, 1-p]) (sublane concat, (2B, 1)).
    inv_n_grip = 1.0 / float(pgrip_ref.shape[0] * pgrip_ref.shape[1])
    p = pgrip_ref[...].astype(jnp.float32)
    t = tgrip_ref[...].astype(jnp.float32)
    pq = jnp.concatenate([p, 1.0 - p], axis=0)      # (2B, 1)
    w = jnp.concatenate([t, 1.0 - t], axis=0)       # (2B, 1)
    lp = jnp.maximum(jnp.log(pq), -100.0)           # clamp matches PyTorch BCELoss
    loss_grip = -jnp.sum(w * lp) * jnp.float32(inv_n_grip)

    # --- lam-mix (lam is a trace-time Python constant) + single SMEM writeback ---
    out_ref[0] = jnp.float32(lam) * loss_vel + jnp.float32(1.0 - lam) * loss_grip
    out_ref[1] = loss_vel
    out_ref[2] = loss_grip


def _mse_only_kernel(pvel_ref, tvel_ref, out_ref):
    inv_n_vel = 1.0 / float(pvel_ref.shape[0] * pvel_ref.shape[1])
    dv = pvel_ref[...].astype(jnp.float32) - tvel_ref[...].astype(jnp.float32)
    out_ref[0] = jnp.sum(dv * dv) * jnp.float32(inv_n_vel)


def make_bc_criterion(lam):
    """JAX/Pallas equivalent of BCCriterion(lam). Returns criterion(pred, target)."""
    lam = float(lam)

    @jax.jit
    def _fused(pred_vel, tgt_vel, pred_grip, tgt_grip):
        n_vel = int(pred_vel.size)
        n_grip = int(pred_grip.size)
        bytes_in = sum(int(a.size * a.dtype.itemsize)
                       for a in (pred_vel, tgt_vel, pred_grip, tgt_grip))
        out = pl.pallas_call(
            functools.partial(_fused_bc_kernel, lam=lam),
            out_shape=jax.ShapeDtypeStruct((3,), jnp.float32),
            in_specs=[_VMEM, _VMEM, _VMEM, _VMEM],
            out_specs=_SMEM,
            cost_estimate=pl.CostEstimate(
                flops=3 * n_vel + 8 * n_grip + 4,
                transcendentals=2 * n_grip,
                bytes_accessed=bytes_in + 12,
            ),
        )(pred_vel, tgt_vel, pred_grip, tgt_grip)
        return out[0], out[1], out[2]

    @jax.jit
    def _vel_only(pred_vel, tgt_vel):
        n_vel = int(pred_vel.size)
        bytes_in = 2 * int(pred_vel.size * pred_vel.dtype.itemsize)
        out = pl.pallas_call(
            _mse_only_kernel,
            out_shape=jax.ShapeDtypeStruct((1,), jnp.float32),
            in_specs=[_VMEM, _VMEM],
            out_specs=_SMEM,
            cost_estimate=pl.CostEstimate(
                flops=3 * n_vel,
                transcendentals=0,
                bytes_accessed=bytes_in + 4,
            ),
        )(pred_vel, tgt_vel)
        return out[0]

    def criterion(pred, target):
        """Returns (loss, log_loss) with DEVICE scalars in log_loss (no host sync).

        Convert to Python float only at logging time (outside the hot path)."""
        if 'grip' in target:
            loss, loss_vel, loss_grip = _fused(
                pred['vel'], target['vel'], pred['grip'], target['grip'])
            return loss, {'loss_vel': loss_vel, 'loss_grip': loss_grip}
        loss_vel = _vel_only(pred['vel'], target['vel'])
        return loss_vel, {'loss_vel': loss_vel}

    return criterion


if __name__ == "__main__":
    key = jax.random.PRNGKey(0)
    k1, k2, k3, k4 = jax.random.split(key, 4)

    B, D_VEL = 8, 32
    LAM = 0.7

    pred_vel = jax.random.normal(k1, (B, D_VEL), dtype=jnp.float32)
    tgt_vel = jax.random.normal(k2, (B, D_VEL), dtype=jnp.float32)
    pred_grip = jax.nn.sigmoid(jax.random.normal(k3, (B, 1), dtype=jnp.float32))
    tgt_grip = jax.random.bernoulli(k4, 0.5, (B, 1)).astype(jnp.float32)

    pred = {'vel': pred_vel, 'grip': pred_grip}
    target = {'vel': tgt_vel, 'grip': tgt_grip}

    bc_criterion = make_bc_criterion(LAM)

    loss, log_loss = bc_criterion(pred, target)
    loss = jax.block_until_ready(loss)

    # exercise the no-grip branch once
    loss_no_grip, _ = bc_criterion(pred, {'vel': tgt_vel})
    jax.block_until_ready(loss_no_grip)

    # sanity check against a pure-JAX reference (host conversion only here, at
    # "logging time", outside the jitted hot path)
    ref_vel = jnp.mean((pred_vel - tgt_vel) ** 2)
    ref_grip = jnp.mean(-(tgt_grip * jnp.maximum(jnp.log(pred_grip), -100.0)
                          + (1.0 - tgt_grip) * jnp.maximum(jnp.log(1.0 - pred_grip), -100.0)))
    ref_loss = LAM * ref_vel + (1.0 - LAM) * ref_grip
    assert abs(float(loss) - float(ref_loss)) < 1e-5, (float(loss), float(ref_loss))
    assert abs(float(log_loss['loss_vel']) - float(ref_vel)) < 1e-5
    assert abs(float(log_loss['loss_grip']) - float(ref_grip)) < 1e-5
    assert abs(float(loss_no_grip) - float(ref_vel)) < 1e-5

    print("KERNEL_OK")
</pallas_src>

<mosaic_0001>
module attributes {stable_mosaic.version = 11 : i64} {
  func.func @_fused_bc_kernel(%arg0: memref<8x32xf32, #tpu.memory_space<vmem>>, %arg1: memref<8x32xf32, #tpu.memory_space<vmem>>, %arg2: memref<8x1xf32, #tpu.memory_space<vmem>>, %arg3: memref<8x1xf32, #tpu.memory_space<vmem>>, %arg4: memref<3xf32, #tpu.memory_space<smem>>) attributes {dimension_semantics = [], scalar_prefetch = 0 : i64, scratch_operands = 0 : i64, tpu.core_type = #tpu.core_type<tc>} {
    %c0 = arith.constant 0 : index
    %c0_0 = arith.constant 0 : index
    %0 = vector.load %arg0[%c0, %c0_0] : memref<8x32xf32, #tpu.memory_space<vmem>>, vector<8x32xf32>
    %c0_1 = arith.constant 0 : index
    %c0_2 = arith.constant 0 : index
    %1 = vector.load %arg1[%c0_1, %c0_2] : memref<8x32xf32, #tpu.memory_space<vmem>>, vector<8x32xf32>
    %2 = arith.subf %0, %1 : vector<8x32xf32>
    %3 = arith.mulf %2, %2 : vector<8x32xf32>
    %4 = vector.shape_cast %3 : vector<8x32xf32> to vector<1x8x32xf32>
    %cst = arith.constant dense<0.000000e+00> : vector<1xf32>
    %5 = vector.multi_reduction <add>, %4, %cst [1, 2] : vector<1x8x32xf32> to vector<1xf32>
    %6 = vector.shape_cast %5 : vector<1xf32> to vector<1x1x1xf32>
    %7 = vector.extract %6[0, 0, 0] : f32 from vector<1x1x1xf32>
    %cst_3 = arith.constant 3.906250e-03 : f32
    %8 = arith.mulf %7, %cst_3 : f32
    %c0_4 = arith.constant 0 : index
    %c0_5 = arith.constant 0 : index
    %9 = vector.load %arg2[%c0_4, %c0_5] : memref<8x1xf32, #tpu.memory_space<vmem>>, vector<8x1xf32>
    %c0_6 = arith.constant 0 : index
    %c0_7 = arith.constant 0 : index
    %10 = vector.load %arg3[%c0_6, %c0_7] : memref<8x1xf32, #tpu.memory_space<vmem>>, vector<8x1xf32>
    %cst_8 = arith.constant 1.000000e+00 : f32
    %11 = vector.broadcast %cst_8 : f32 to vector<8x1xf32>
    %12 = arith.subf %11, %9 : vector<8x1xf32>
    %13 = tpu.concatenate %9, %12 in 0 : vector<8x1xf32>, vector<8x1xf32> -> vector<16x1xf32>
    %cst_9 = arith.constant 1.000000e+00 : f32
    %14 = vector.broadcast %cst_9 : f32 to vector<8x1xf32>
    %15 = arith.subf %14, %10 : vector<8x1xf32>
    %16 = tpu.concatenate %10, %15 in 0 : vector<8x1xf32>, vector<8x1xf32> -> vector<16x1xf32>
    %17 = math.log %13 : vector<16x1xf32>
    %cst_10 = arith.constant -1.000000e+02 : f32
    %18 = vector.broadcast %cst_10 : f32 to vector<16x1xf32>
    %19 = arith.maximumf %17, %18 : vector<16x1xf32>
    %20 = arith.mulf %16, %19 : vector<16x1xf32>
    %21 = vector.shape_cast %20 : vector<16x1xf32> to vector<1x16x1xf32>
    %cst_11 = arith.constant dense<0.000000e+00> : vector<1xf32>
    %22 = vector.multi_reduction <add>, %21, %cst_11 [1, 2] : vector<1x16x1xf32> to vector<1xf32>
    %23 = vector.shape_cast %22 : vector<1xf32> to vector<1x1x1xf32>
    %24 = vector.extract %23[0, 0, 0] : f32 from vector<1x1x1xf32>
    %cst_12 = arith.constant 0.000000e+00 : f32
    %25 = arith.subf %cst_12, %24 : f32
    %cst_13 = arith.constant 1.250000e-01 : f32
    %26 = arith.mulf %25, %cst_13 : f32
    %cst_14 = arith.constant 0.699999988 : f32
    %27 = arith.mulf %cst_14, %8 : f32
    %cst_15 = arith.constant 3.000000e-01 : f32
    %28 = arith.mulf %cst_15, %26 : f32
    %29 = arith.addf %27, %28 : f32
    %c0_16 = arith.constant 0 : index
    %30 = memref.load %arg4[%c0_16] : memref<3xf32, #tpu.memory_space<smem>>
    memref.store %29, %arg4[%c0_16] : memref<3xf32, #tpu.memory_space<smem>>
    %c1 = arith.constant 1 : index
    %31 = memref.load %arg4[%c1] : memref<3xf32, #tpu.memory_space<smem>>
    memref.store %8, %arg4[%c1] : memref<3xf32, #tpu.memory_space<smem>>
    %c2 = arith.constant 2 : index
    %32 = memref.load %arg4[%c2] : memref<3xf32, #tpu.memory_space<smem>>
    memref.store %26, %arg4[%c2] : memref<3xf32, #tpu.memory_space<smem>>
    return
  }
}

</mosaic_0001>

<llo_original>
// kernel: _fused.1
$region0: #{_fused.1}
  #allocation0 [shape = 'u32[]', space=smem, size = 0x4, offset = 0x4, fixed_abs, tag = 'smem constant byte address 0x4 - core index']
  #allocation1 [shape = 'u32[72,128]{1,0:T(1,128)}', space=vmem, size = 0x9000, scoped, tag = 'internal scratch']
  %s0 = inlined_call_operand.vmem [shape: f32[8,32], index: 0, kind: input, shape index: {}]
  %s1 = inlined_call_operand.vmem [shape: f32[8,32], index: 1, kind: input, shape index: {}]
  %s2 = inlined_call_operand.vmem [shape: f32[8,1], index: 2, kind: input, shape index: {}]
  %s3 = inlined_call_operand.vmem [shape: f32[8,1], index: 3, kind: input, shape index: {}]
  %s4 = inlined_call_operand.vmem [shape: f32[3], index: 4, kind: output, shape index: {}]
  %s5 = sld [smem:[#allocation0]]
  $region26: #{_fused.1} parent=0
    _
  %s7 = ssub.s32 1, %s5
  %s8 = scalar_select 0, %s7, %s5
  $region1: #{_fused.1} parent=0
    #allocation2 [shape = 'u8[512]{0}', space=smem, size = 0x200, scoped, tag = 'output window, operand 0, single buffered']
    #allocation3 [shape = 's32[1]{0}', space=sflag, size = 0x4, scoped, tag = 'scoped memory for _fused.1']
    %9 = vsyncpa [#allocation3], 0
    // Predicated region
    $region2: #{_fused.1} parent=1 // pred_check
      _
    $region3: #{_fused.1} parent=1 // pred_check_branch
      %11 = sbr.rel (0) target = $region5
    $region4: #{_fused.1} parent=1 // pred_region
      _
    $region5: #{_fused.1} parent=1 // pred_fallthru
      _
    // Predicated region
    $region6: #{_fused.1} parent=1 // pred_check
      _
    $region7: #{_fused.1} parent=1 // pred_check_branch
      %13 = sbr.rel (0) target = $region9
    $region8: #{_fused.1} parent=1 // pred_region
      _
    $region9: #{_fused.1} parent=1 // pred_fallthru
      _
    // Predicated region
    $region10: #{_fused.1} parent=1 // pred_check
      _
    $region11: #{_fused.1} parent=1 // pred_check_branch
      %15 = sbr.rel (0) target = $region13
    $region12: #{_fused.1} parent=1 // pred_region
      _
    $region13: #{_fused.1} parent=1 // pred_fallthru
      _
    // Predicated region
    $region14: #{_fused.1} parent=1 // pred_check
      _
    $region15: #{_fused.1} parent=1 // pred_check_branch
      %17 = sbr.rel (0) target = $region17
    $region16: #{_fused.1} parent=1 // pred_region
      _
    $region17: #{_fused.1} parent=1 // pred_fallthru
      _
    %v18 = vld [vmem:[%s0] sm:$0xff]
    %v19 = vld [vmem:[%s1] sm:$0xff]
    %v20 = vsub.f32 %v18, %v19
    %v21 = vmul.f32 %v20, %v20
    %vm22 = vcmask 261120
    %v23 = vsel %vm22, %v21, 0.0
    %24 = vadd.xlane.f32.xlu0 %v23
    %v25 = vpop.xlane.xlu0 %24
    %v26 = vrot.slane %v25, 4
    %v27 = vadd.f32 %v25, %v26
    %v28 = vrot.slane %v27, 2
    %v29 = vadd.f32 %v27, %v28
    %v30 = vrot.slane %v29, 1
    %v31 = vadd.f32 %v29, %v30
    %s32 = vtos %v31
    %s33 = smul.f32 %s32, 0.00390625
    %v34 = vld [vmem:[%s2] sm:$0xff]
    %v35 = vld [vmem:[%s3] sm:$0xff]
    %v36 = vsub.f32 1.0, %v34
    %v37 = vsub.f32 1.0, %v35
    %v38 = vlog2.pop %v34
    %v39 = vmul.f32 %v38, 0.6931472
    %v40 = vlog2.pop %v36
    %v41 = vmul.f32 %v40, 0.6931472
    %v42 = vmax.f32 %v39, -100.0
    %v43 = vmax.f32 %v41, -100.0
    %v44 = vmul.f32 %v35, %v42
    %v45 = vmul.f32 %v37, %v43
    %vm46 = vcmask 7168
    %v47 = vsel %vm46, %v44, 0.0
    %v48 = vsel %vm46, %v45, 0.0
    %v49 = vadd.f32 %v47, %v48
    %50 = vadd.xlane.f32.xlu0 %v49
    %v51 = vpop.xlane.xlu0 %50
    %v52 = vrot.slane %v51, 4
    %v53 = vadd.f32 %v51, %v52
    %v54 = vrot.slane %v53, 2
    %v55 = vadd.f32 %v53, %v54
    %v56 = vrot.slane %v55, 1
    %v57 = vadd.f32 %v55, %v56
    %s58 = vtos %v57
    %s59 = ssub.f32 0.0, %s58
    %s60 = smul.f32 %s59, 0.125
    %s61 = smul.f32 %s33, 0.7
    %s62 = smul.f32 %s60, 0.3
    %s63 = sadd.f32 %s61, %s62
    %s64 = scalar_lea.smem [#allocation2], 0
    %65 = sst [smem:[%s64]] %s63
    %s66 = scalar_lea.smem [#allocation2], 1
    %67 = sst [smem:[%s66]] %s33
    %s68 = scalar_lea.smem [#allocation2], 2
    %69 = sst [smem:[%s68]] %s60
    // Predicated region
    $region18: #{_fused.1} parent=1 // pred_check
      _
    $region19: #{_fused.1} parent=1 // pred_check_branch
      %71 = sbr.rel (0) target = $region21
    $region20: #{_fused.1} parent=1 // pred_region
      %73 = vsyncadd [#allocation3], 0
      %s75 = sshll.u32 %s4, 4
      %s76 = int_to_ptr.vmem [resolvable:$true] %s75
      %78 = dma.smem_to_vmem [#allocation2], 16, %s76, [#allocation3]
    $region21: #{_fused.1} parent=1 // pred_fallthru
      _
    // Predicated region
    $region22: #{_fused.1} parent=1 // pred_check
      _
    $region23: #{_fused.1} parent=1 // pred_check_branch
      %80 = sbr.rel (0) target = $region25
    $region24: #{_fused.1} parent=1 // pred_region
      %82 = dma.done [#allocation3], 16
    $region25: #{_fused.1} parent=1 // pred_fallthru
      _
    %83 = sfence
    %84 = vsyncpa [#allocation3], 1

</llo_original>
